<compile_context>
chip_gen: v7x
topology: tpu7x:2x2x1
jax: 0.10.0
libtpu: 0.0.40
codegen_flags: <defaults>
</compile_context>

<pallas_src>
import jax
import jax.numpy as jnp
from jax.experimental import pallas as pl
from jax.experimental.pallas import tpu as pltpu


def _round_up(v: int, m: int) -> int:
    return ((v + m - 1) // m) * m


def _pick_tb(B: int, per_batch_bytes: int, budget: int = 4 << 20) -> int:
    """Batch elements per grid step: amortize the ~0.35us/step overhead, but
    keep >=2 grid steps along the (parallel) batch axis so v7x's two
    TensorCores both get work."""
    best = 1
    for tb in range(1, min(B, 8) + 1):
        if B % tb:
            continue
        if tb * per_batch_bytes > budget:
            break
        if B == 1 or B // tb >= 2:
            best = tb
    return best


def _patch_embed_kernel(patches_ref, w_ref, posb_ref, out_ref):
    # patches_ref: (TB, TN, K)  bf16 — token row 0 is all-zero (cls slot)
    # w_ref:       (K, Ep)      bf16 — block index constant => VMEM resident
    # posb_ref:    (TN, Ep)     f32  — row 0 = cls + pos[0]; rows 1.. = pos[1:] + conv_b
    # out_ref:     (TB, TN, Ep) out_dtype
    w = w_ref[...]
    pb = posb_ref[...]
    for t in range(out_ref.shape[0]):           # static small TB; unrolled MXU calls
        acc = jnp.dot(patches_ref[t], w, preferred_element_type=jnp.float32)  # MXU, fp32 acc
        out_ref[t] = (acc + pb).astype(out_ref.dtype)                         # fused epilogue


def patch_embedding(x, conv_w, conv_b, cls_token, positions, patch_size,
                    compute_dtype=jnp.bfloat16, out_dtype=jnp.float32):
    """x: [B, C, H, W] (NCHW). conv_w: [E, C, P, P]. conv_b: [E].
    cls_token: [1, 1, E]. positions: [N+1, E].  Returns [B, N+1, E] in out_dtype."""
    B, C, H, W = x.shape
    E = conv_w.shape[0]
    P = patch_size
    nH, nW = H // P, W // P
    N = nH * nW
    K = C * P * P
    T = N + 1                      # tokens including the cls slot

    # ---- tiling ----------------------------------------------------------
    Ep = _round_up(E, 128)         # lane-dense stores / MXU-aligned output dim
    if T <= 1024:
        TN, Tp = T, T              # single token tile; no row padding, no post-slice in N
    else:
        TN = 256                   # large-N fallback: 256-row tiles (MXU pass granularity)
        Tp = _round_up(T, TN)

    cd_size = jnp.dtype(compute_dtype).itemsize
    out_size = jnp.dtype(out_dtype).itemsize
    per_batch_bytes = TN * K * cd_size + TN * Ep * out_size
    TB = _pick_tb(B, per_batch_bytes)

    # ---- operand preparation --------------------------------------------
    # TODO(synk): fuse the patch extraction (reshape/transpose below) into the
    # kernel via a BlockSpec over rows-of-patches of x to remove this HBM
    # round-trip entirely; here we at least do it in bf16 (half the traffic).
    x_c = x.astype(compute_dtype)
    patches = x_c.reshape(B, C, nH, P, nW, P)
    patches = patches.transpose(0, 2, 4, 1, 3, 5).reshape(B, N, K)
    # cls fold: prepend one all-zero token row -> row 0 of kernel output is
    # 0 @ W + (cls + pos[0]).  (Tp - T extra zero rows only in the large-N path.)
    patches = jnp.pad(patches, ((0, 0), (1, Tp - T), (0, 0)))            # (B, Tp, K) bf16

    w = jnp.pad(conv_w.reshape(E, K).T, ((0, 0), (0, Ep - E)))           # (K, Ep)
    w = w.astype(compute_dtype)

    posb = jnp.concatenate(
        [cls_token.reshape(1, E).astype(jnp.float32)
         + positions[0:1, :].astype(jnp.float32),                        # row 0: cls + pos0
         positions[1:, :].astype(jnp.float32)
         + conv_b.astype(jnp.float32)[None, :]],                         # rows 1..: pos + conv bias
        axis=0)                                                          # (T, E) f32
    posb = jnp.pad(posb, ((0, Tp - T), (0, Ep - E)))                     # (Tp, Ep) f32

    # ---- grid / specs ----------------------------------------------------
    num_j = Tp // TN               # token tiles (outer, slowly varying -> posb resident)
    num_b = B // TB                # batch tiles (inner, parallel across TCs)
    grid = (num_j, num_b)

    tile_bytes = (TB * TN * K * cd_size          # patches tile
                  + K * Ep * cd_size             # weight (resident)
                  + TN * Ep * 4                  # pos+bias tile (resident per j)
                  + TB * TN * Ep * out_size)     # output tile
    vmem_limit = int(min(48 << 20, max(24 << 20, 2 * tile_bytes + (4 << 20))))

    flops = 2 * B * Tp * K * Ep
    bytes_accessed = (B * Tp * K * cd_size       # patches read once
                      + K * Ep * cd_size         # weight read once
                      + Tp * Ep * 4              # pos+bias read once per token tile
                      + B * Tp * Ep * out_size)  # output writeback

    out = pl.pallas_call(
        _patch_embed_kernel,
        out_shape=jax.ShapeDtypeStruct((B, Tp, Ep), out_dtype),
        grid_spec=pltpu.PrefetchScalarGridSpec(
            num_scalar_prefetch=0,
            grid=grid,
            in_specs=[
                pl.BlockSpec((TB, TN, K), lambda j, b: (b, j, 0)),   # patch tile
                pl.BlockSpec((K, Ep), lambda j, b: (0, 0)),          # weight (resident)
                pl.BlockSpec((TN, Ep), lambda j, b: (j, 0)),         # pos+bias (resident per j)
            ],
            out_specs=pl.BlockSpec((TB, TN, Ep), lambda j, b: (b, j, 0)),
        ),
        compiler_params=pltpu.CompilerParams(
            dimension_semantics=("parallel", "parallel"),
            vmem_limit_bytes=vmem_limit),
        cost_estimate=pl.CostEstimate(flops=flops, transcendentals=0,
                                      bytes_accessed=bytes_accessed),
    )(patches, w, posb)

    if Tp != T or Ep != E:
        out = out[:, :T, :E]        # strip alignment padding only (no concat needed)
    return out


def patch_embedding_ref(x, conv_w, conv_b, cls_token, positions, patch_size,
                        compute_dtype=jnp.float32):
    """Pure-JAX reference mirroring the PyTorch module.
    compute_dtype lets us build a precision-matched (bf16-matmul) reference."""
    B, C, H, W = x.shape
    E = conv_w.shape[0]
    P = patch_size
    nH, nW = H // P, W // P
    N = nH * nW
    K = C * P * P
    patches = x.reshape(B, C, nH, P, nW, P).transpose(0, 2, 4, 1, 3, 5)
    patches = patches.reshape(B, N, K)
    w = conv_w.reshape(E, K).T
    proj = jnp.dot(patches.astype(compute_dtype), w.astype(compute_dtype),
                   preferred_element_type=jnp.float32)
    proj = proj + conv_b.astype(jnp.float32)[None, None, :]
    cls = jnp.broadcast_to(cls_token.reshape(1, 1, E).astype(jnp.float32), (B, 1, E))
    out = jnp.concatenate([cls, proj], axis=1) + positions.astype(jnp.float32)[None, :, :]
    return out


if __name__ == "__main__":
    # Small shapes consistent with the module's forward:
    #   in_channels=4, patch_size=4, img_size=16, emb_size=32, batch=2
    B, C, IMG, P, E = 2, 4, 16, 4, 32
    N = (IMG // P) ** 2

    key = jax.random.PRNGKey(0)
    kx, kw, kb, kc, kp = jax.random.split(key, 5)
    x = jax.random.normal(kx, (B, C, IMG, IMG), dtype=jnp.float32)
    conv_w = jax.random.normal(kw, (E, C, P, P), dtype=jnp.float32) * 0.02
    conv_b = jax.random.normal(kb, (E,), dtype=jnp.float32) * 0.02
    cls_token = jax.random.normal(kc, (1, 1, E), dtype=jnp.float32)
    positions = jax.random.normal(kp, (N + 1, E), dtype=jnp.float32)

    fn = jax.jit(patch_embedding, static_argnums=(5,))
    out = fn(x, conv_w, conv_b, cls_token, positions, P)
    out = jax.block_until_ready(out)
    assert out.shape == (B, N + 1, E), out.shape

    # Precision-matched reference (bf16 matmul, fp32 accumulation) — tight check.
    ref_bf16 = patch_embedding_ref(x, conv_w, conv_b, cls_token, positions, P,
                                   compute_dtype=jnp.bfloat16)
    assert jnp.allclose(out, ref_bf16, atol=1e-3, rtol=1e-3), \
        "mismatch vs precision-matched reference"

    # Full fp32 module-semantics reference — looser check (bf16 matmul rounding).
    ref_f32 = patch_embedding_ref(x, conv_w, conv_b, cls_token, positions, P,
                                  compute_dtype=jnp.float32)
    assert jnp.allclose(out, ref_f32, atol=5e-2, rtol=5e-2), \
        "mismatch vs fp32 module reference"

    print("KERNEL_OK")
</pallas_src>

<mosaic_0001>
module attributes {stable_mosaic.version = 11 : i64} {
  func.func @_patch_embed_kernel(%arg0: i32, %arg1: i32, %arg2: memref<1x17x64xbf16, #tpu.memory_space<vmem>>, %arg3: memref<64x128xbf16, #tpu.memory_space<vmem>>, %arg4: memref<17x128xf32, #tpu.memory_space<vmem>>, %arg5: memref<1x17x128xf32, #tpu.memory_space<vmem>>) attributes {dimension_semantics = [#tpu.dimension_semantics<parallel>, #tpu.dimension_semantics<parallel>], iteration_bounds = array<i64: 1, 2>, scalar_prefetch = 0 : i64, scratch_operands = 0 : i64, tpu.core_type = #tpu.core_type<tc>, window_params = [{transform_indices = @transform_0, window_bounds = array<i64: 1, 17, 64>}, {pipeline_mode = #tpu.pipeline_mode<synchronous>, transform_indices = @transform_1, window_bounds = array<i64: 64, 128>}, {transform_indices = @transform_2, window_bounds = array<i64: 17, 128>}, {transform_indices = @transform_3, window_bounds = array<i64: 1, 17, 128>}]} {
    %c0 = arith.constant 0 : index
    %c0_0 = arith.constant 0 : index
    %0 = vector.load %arg3[%c0, %c0_0] : memref<64x128xbf16, #tpu.memory_space<vmem>>, vector<64x128xbf16>
    %c0_1 = arith.constant 0 : index
    %c0_2 = arith.constant 0 : index
    %1 = vector.load %arg4[%c0_1, %c0_2] : memref<17x128xf32, #tpu.memory_space<vmem>>, vector<17x128xf32>
    %c0_3 = arith.constant 0 : index
    %c0_4 = arith.constant 0 : index
    %c0_5 = arith.constant 0 : index
    %2 = vector.load %arg2[%c0_3, %c0_4, %c0_5] : memref<1x17x64xbf16, #tpu.memory_space<vmem>>, vector<1x17x64xbf16>
    %3 = vector.shape_cast %2 : vector<1x17x64xbf16> to vector<17x64xbf16>
    %cst = arith.constant dense<0.000000e+00> : vector<17x128xf32>
    %4 = tpu.matmul %3, %0, %cst {dimension_numbers = #tpu.dot_dimension_numbers<[1], [0], [0], [1], [0, 0, 1, 1], [], []>} : vector<17x64xbf16>, vector<64x128xbf16>, vector<17x128xf32> -> vector<17x128xf32>
    %5 = arith.addf %4, %1 : vector<17x128xf32>
    %c0_6 = arith.constant 0 : index
    %c0_7 = arith.constant 0 : index
    %c0_8 = arith.constant 0 : index
    %6 = vector.load %arg5[%c0_6, %c0_7, %c0_8] : memref<1x17x128xf32, #tpu.memory_space<vmem>>, vector<1x17x128xf32>
    %7 = vector.shape_cast %6 : vector<1x17x128xf32> to vector<17x128xf32>
    %8 = vector.shape_cast %5 : vector<17x128xf32> to vector<1x17x128xf32>
    tpu.vector_store %arg5[%c0_6, %c0_7, %c0_8], %8 {strides = array<i32>} : memref<1x17x128xf32, #tpu.memory_space<vmem>>, vector<1x17x128xf32>,
    return
  }
  func.func @transform_0(%arg0: i32, %arg1: i32) -> (i32, i32, i32) {
    %c0_i32 = arith.constant 0 : i32
    %c0_i32_0 = arith.constant 0 : i32
    return %arg1, %arg0, %c0_i32 : i32, i32, i32
  }
  func.func @transform_1(%arg0: i32, %arg1: i32) -> (i32, i32) {
    %c0_i32 = arith.constant 0 : i32
    %c0_i32_0 = arith.constant 0 : i32
    %c0_i32_1 = arith.constant 0 : i32
    return %c0_i32, %c0_i32_0 : i32, i32
  }
  func.func @transform_2(%arg0: i32, %arg1: i32) -> (i32, i32) {
    %c0_i32 = arith.constant 0 : i32
    %c0_i32_0 = arith.constant 0 : i32
    return %arg0, %c0_i32 : i32, i32
  }
  func.func @transform_3(%arg0: i32, %arg1: i32) -> (i32, i32, i32) {
    %c0_i32 = arith.constant 0 : i32
    %c0_i32_0 = arith.constant 0 : i32
    return %arg1, %arg0, %c0_i32 : i32, i32, i32
  }
}

</mosaic_0001>

<llo_original>
// kernel: patch_embedding.1
$region0: #{patch_embedding.1}
  #allocation0 [shape = 'u32[]', space=smem, size = 0x4, offset = 0x4, fixed_abs, tag = 'smem constant byte address 0x4 - core index']
  #allocation1 [shape = 'u32[144,128]{1,0:T(1,128)}', space=vmem, size = 0x12000, scoped, tag = 'internal scratch']
  %s0 = inlined_call_operand.vmem [shape: bf16[2,17,64], index: 0, kind: input, shape index: {}]
  %s1 = inlined_call_operand.vmem [shape: bf16[64,128], index: 1, kind: input, shape index: {}]
  %s2 = inlined_call_operand.vmem [shape: f32[17,128], index: 2, kind: input, shape index: {}]
  %s3 = inlined_call_operand.vmem [shape: f32[2,17,128], index: 3, kind: output, shape index: {}]
  %s4 = sld [smem:[#allocation0]]
  $region45: #{patch_embedding.1} parent=0
    _
  %s6 = ssub.s32 1, %s4
  %s7 = scalar_select 0, %s6, %s4
  loop: start=0, step=1, limit=4
  $region2: #{patch_embedding.1} parent=0 // loop_pre_header
    _
  $region3: #{patch_embedding.1} parent=0 // loop_header
    %s9 = sphi 0, %s13
    %p10 = scmp.ge.s32.totalorder %s9, 4
    %s16 = sphi 0, %s28
    %s17 = sphi 0, %s24
    %s18 = sphi 0, %s16
    %s19 = sphi 0, %s17
    %s20 = sphi 0, %s18
    %s21 = sphi 0, %s19
    %s33 = sphi 0, %s35
    %s36 = sphi 0, %s33
    %s37 = sphi 0, %s36
    %s53 = sphi 0, %s37
    %s57 = sphi 0, %s57
    %s59 = sphi 0, %s57
    %s60 = sphi 0, %s59
    %s74 = sphi 0, %s60
    %s80 = sphi 0, %s82
    %s83 = sphi 0, %s80
    %s84 = sphi 0, %s83
    %s100 = sphi 0, %s84
    %s108 = sphi 0, %s110
    %s111 = sphi 0, %s108
    %s112 = sphi 0, %s111
    %s128 = sphi 0, %s112
  $region4: #{patch_embedding.1} parent=0 // loop_header_branch
    %12 = sbr.rel (%p10) target = $region8
  $region5: #{patch_embedding.1} parent=0 // loop_body
    %s14 = ssub.s32 %s9, 1
    %s15 = ssub.s32 %s9, 2
    %s22 = sadd.s32 1, %s17
    %p23 = scmp.ge.s32.totalorder %s22, 2
    %s24 = scalar_select %p23, 0, %s22
    %s25 = sadd.s32 1, %s16
    %s26 = scalar_select %p23, %s25, %s16
    %p27 = scmp.ge.s32.totalorder %s26, 1
    %s28 = scalar_select %p27, 0, %s26
    %s29 = ssub.s32 %s17, %s24
    %s30 = ssub.s32 %s16, %s28
    %s31 = sor.u32 %s29, %s30
    %p32 = scmp.eq.s32.totalorder %s31, 0
    %s34 = sadd.s32 %s33, 1
    %s35 = scalar_select %p32, %s33, %s34
    %p38 = pneg %p32
    %p39 = scmp.eq.s32.totalorder %s9, 1
    %p40 = por %p38, %p39
    %p41 = scmp.ne.s32.totalorder %s33, %s36
    %p42 = scmp.eq.s32.totalorder %s9, 0
    %p43 = por %p41, %p42
    %p44 = scmp.ne.s32.totalorder %s33, %s36
    %p45 = scmp.eq.s32.totalorder %s14, 1
    %p46 = por %p44, %p45
    %p47 = scmp.ne.s32.totalorder %s36, %s37
    %p48 = scmp.eq.s32.totalorder %s14, 0
    %p49 = por %p47, %p48
    %p50 = scmp.ne.s32.totalorder %s36, %s37
    %p51 = scmp.eq.s32.totalorder %s15, 1
    %p52 = por %p50, %p51
    %p54 = scmp.ne.s32.totalorder %s37, %s53
    %p55 = scmp.eq.s32.totalorder %s15, 0
    %p56 = por %p54, %p55
    %s58 = sadd.s32 %s57, 1
    %p61 = scmp.eq.s32.totalorder %s9, 1
    %p62 = scmp.ne.s32.totalorder %s57, %s59
    %p63 = scmp.eq.s32.totalorder %s9, 0
    %p64 = por %p62, %p63
    %p65 = scmp.ne.s32.totalorder %s57, %s59
    %p66 = scmp.eq.s32.totalorder %s14, 1
    %p67 = por %p65, %p66
    %p68 = scmp.ne.s32.totalorder %s59, %s60
    %p69 = scmp.eq.s32.totalorder %s14, 0
    %p70 = por %p68, %p69
    %p71 = scmp.ne.s32.totalorder %s59, %s60
    %p72 = scmp.eq.s32.totalorder %s15, 1
    %p73 = por %p71, %p72
    %p75 = scmp.ne.s32.totalorder %s60, %s74
    %p76 = scmp.eq.s32.totalorder %s15, 0
    %p77 = por %p75, %p76
    %s78 = ssub.s32 %s16, %s28
    %p79 = scmp.eq.s32.totalorder %s78, 0
    %s81 = sadd.s32 %s80, 1
    %s82 = scalar_select %p79, %s80, %s81
    %p85 = pneg %p79
    %p86 = scmp.eq.s32.totalorder %s9, 1
    %p87 = por %p85, %p86
    %p88 = scmp.ne.s32.totalorder %s80, %s83
    %p89 = scmp.eq.s32.totalorder %s9, 0
    %p90 = por %p88, %p89
    %p91 = scmp.ne.s32.totalorder %s80, %s83
    %p92 = scmp.eq.s32.totalorder %s14, 1
    %p93 = por %p91, %p92
    %p94 = scmp.ne.s32.totalorder %s83, %s84
    %p95 = scmp.eq.s32.totalorder %s14, 0
    %p96 = por %p94, %p95
    %p97 = scmp.ne.s32.totalorder %s83, %s84
    %p98 = scmp.eq.s32.totalorder %s15, 1
    %p99 = por %p97, %p98
    %p101 = scmp.ne.s32.totalorder %s84, %s100
    %p102 = scmp.eq.s32.totalorder %s15, 0
    %p103 = por %p101, %p102
    %s104 = ssub.s32 %s17, %s24
    %s105 = ssub.s32 %s16, %s28
    %s106 = sor.u32 %s104, %s105
    %p107 = scmp.eq.s32.totalorder %s106, 0
    %s109 = sadd.s32 %s108, 1
    %s110 = scalar_select %p107, %s108, %s109
    %p113 = pneg %p107
    %p114 = scmp.eq.s32.totalorder %s9, 1
    %p115 = por %p113, %p114
    %p116 = scmp.ne.s32.totalorder %s108, %s111
    %p117 = scmp.eq.s32.totalorder %s9, 0
    %p118 = por %p116, %p117
    %p119 = scmp.ne.s32.totalorder %s108, %s111
    %p120 = scmp.eq.s32.totalorder %s14, 1
    %p121 = por %p119, %p120
    %p122 = scmp.ne.s32.totalorder %s111, %s112
    %p123 = scmp.eq.s32.totalorder %s14, 0
    %p124 = por %p122, %p123
    %p125 = scmp.ne.s32.totalorder %s111, %s112
    %p126 = scmp.eq.s32.totalorder %s15, 1
    %p127 = por %p125, %p126
    %p129 = scmp.ne.s32.totalorder %s112, %s128
    %p130 = scmp.eq.s32.totalorder %s15, 0
    %p131 = por %p129, %p130
    %p132 = scmp.le.s32.totalorder 1, %s9
    %p133 = scmp.lt.s32.totalorder %s9, 3
    %p134 = pnand %p132, %p133
    %p135 = pneg %p134
    // Predicated region
    $region9: #{patch_embedding.1} parent=5 // pred_check
      _
    $region10: #{patch_embedding.1} parent=5 // pred_check_branch
      %137 = sbr.rel (%p134) target = $region12
    $region11: #{patch_embedding.1} parent=5 // pred_region
      %s138 = ssub.s32 %s9, 1
      // Predicated region
      $region13: #{patch_embedding.1} parent=11 // pred_check
        %p139 = pneg %p70
      $region14: #{patch_embedding.1} parent=11 // pred_check_branch
        %141 = sbr.rel (%p139) target = $region16
      $region15: #{patch_embedding.1} parent=11 // pred_region
        _
      $region16: #{patch_embedding.1} parent=11 // pred_fallthru
        _
      // Predicated region
      $region17: #{patch_embedding.1} parent=11 // pred_check
        %p142 = pneg %p96
      $region18: #{patch_embedding.1} parent=11 // pred_check_branch
        %144 = sbr.rel (%p142) target = $region20
      $region19: #{patch_embedding.1} parent=11 // pred_region
        %s145 = smul.u32 3, %s18
        %p146 = scmp.lt.s32.totalorder %s145, 2
        %s147 = scalar_select %p146, %s145, 2
        %s148 = smul.addr %s147, 8
        %s149 = scalar_lea.vmem %s2, %s148
        %s150 = smul.u32 3, %s18
      $region20: #{patch_embedding.1} parent=11 // pred_fallthru
        _
    $region12: #{patch_embedding.1} parent=5 // pred_fallthru
      _
    %p151 = scmp.lt.s32.totalorder %s9, 2
    // Predicated region
    $region21: #{patch_embedding.1} parent=5 // pred_check
      %p152 = pneg %p151
    $region22: #{patch_embedding.1} parent=5 // pred_check_branch
      %154 = sbr.rel (%p152) target = $region24
    $region23: #{patch_embedding.1} parent=5 // pred_region
      // Predicated region
      $region25: #{patch_embedding.1} parent=23 // pred_check
        %p155 = pneg %p43
      $region26: #{patch_embedding.1} parent=23 // pred_check_branch
        %157 = sbr.rel (%p155) target = $region28
      $region27: #{patch_embedding.1} parent=23 // pred_region
        %s158 = smul.u32 3, %s16
        %p159 = scmp.lt.s32.totalorder %s17, 1
        %s160 = scalar_select %p159, %s17, 1
        %p161 = scmp.lt.s32.totalorder %s158, 2
        %s162 = scalar_select %p161, %s158, 2
        %s163 = smul.addr %s160, 3
        %s164 = sadd.s32 %s162, %s163
        %s165 = smul.addr %s164, 4
        %s166 = scalar_lea.vmem %s0, %s165
        %s167 = smul.u32 3, %s16
      $region28: #{patch_embedding.1} parent=23 // pred_fallthru
        _
    $region24: #{patch_embedding.1} parent=5 // pred_fallthru
      _
    %p168 = scmp.le.s32.totalorder 1, %s9
    %p169 = scmp.lt.s32.totalorder %s9, 3
    %p170 = pnand %p168, %p169
    %p171 = pneg %p170
    // Predicated region
    $region29: #{patch_embedding.1} parent=5 // pred_check
      _
    $region30: #{patch_embedding.1} parent=5 // pred_check_branch
      %173 = sbr.rel (%p170) target = $region32
    $region31: #{patch_embedding.1} parent=5 // pred_region
      %s174 = ssub.s32 %s9, 1
      %s175 = smul.u32 3, %s18
      %p176 = scmp.lt.s32.totalorder %s19, 1
      %s177 = scalar_select %p176, %s19, 1
      %p178 = scmp.lt.s32.totalorder %s175, 2
      %s179 = scalar_select %p178, %s175, 2
      %s180 = smul.addr %s177, 3
      %s181 = sadd.s32 %s179, %s180
      %s182 = smul.addr %s181, 4
      %s183 = scalar_lea.vmem %s0, %s182
      %p184 = pneg %p49
      %p185 = pneg %p46
      %p186 = pneg %p70
      %p187 = pneg %p67
      %s188 = smul.u32 3, %s18
      %p189 = scmp.lt.s32.totalorder %s188, 2
      %s190 = scalar_select %p189, %s188, 2
      %s191 = smul.addr %s190, 8
      %s192 = scalar_lea.vmem %s2, %s191
      %p193 = pneg %p96
      %p194 = pneg %p93
      %p195 = pneg %p124
      %p196 = pneg %p121
      %s197 = smul.u32 3, %s18
      %p198 = scmp.lt.s32.totalorder %s19, 1
      %s199 = scalar_select %p198, %s19, 1
      %p200 = scmp.lt.s32.totalorder %s197, 2
      %s201 = scalar_select %p200, %s197, 2
      %s202 = smul.addr %s199, 3
      %s203 = sadd.s32 %s201, %s202
      %s204 = smul.addr %s203, 8
      %s205 = scalar_lea.vmem %s3, %s204
      %s206 = smul.u32 3, %s18
      %p207 = scmp.lt.s32.totalorder %s19, 1
      %s208 = scalar_select %p207, %s19, 1
      %p209 = scmp.lt.s32.totalorder %s206, 2
      %s210 = scalar_select %p209, %s206, 2
      %s211 = smul.addr %s208, 3
      %s212 = sadd.s32 %s210, %s211
      %s213 = smul.addr %s212, 4
      %s214 = scalar_lea.vmem %s0, %s213
      %s215 = smul.u32 3, %s18
      %s216 = smul.u32 3, %s18
      %p217 = scmp.lt.s32.totalorder %s216, 2
      %s218 = scalar_select %p217, %s216, 2
      %s219 = smul.addr %s218, 8
      %s220 = scalar_lea.vmem %s2, %s219
      %s221 = smul.u32 3, %s18
      %s222 = smul.u32 3, %s18
      %p223 = scmp.lt.s32.totalorder %s19, 1
      %s224 = scalar_select %p223, %s19, 1
      %p225 = scmp.lt.s32.totalorder %s222, 2
      %s226 = scalar_select %p225, %s222, 2
      %s227 = smul.addr %s224, 3
      %s228 = sadd.s32 %s226, %s227
      %s229 = smul.addr %s228, 8
      %s230 = scalar_lea.vmem %s3, %s229
      %s231 = smul.u32 3, %s18
      %v233 = vld [vmem:[%s1] sm:$0xf]
      %v234 = vld [vmem:[%s1 + $0x4] sm:$0xf]
      %v235 = vld [vmem:[%s1 + $0x8] sm:$0xf]
      %v236 = vld [vmem:[%s1 + $0xc] sm:$0xf]
      %v237 = vld [vmem:[%s1 + $0x10] sm:$0xf]
      %v238 = vld [vmem:[%s1 + $0x14] sm:$0xf]
      %v239 = vld [vmem:[%s1 + $0x18] sm:$0xf]
      %v240 = vld [vmem:[%s1 + $0x1c] sm:$0xf]
      %v241 = vld [vmem:[%s220] sm:$0xff]
      %v242 = vld [vmem:[%s220 + $0x8] sm:$0xff]
      %v243 = vld [vmem:[%s220 + $0x10] sm:$0x1]
      %v244 = vld [vmem:[%s214] sm:$0xf]
      %v245 = vld [vmem:[%s214 + $0x4] sm:$0xf]
      %v246 = vld [vmem:[%s214 + $0x8] sm:$0x1]
      %v250 = vunpack.c.l.b16 %v244
      %v251 = vunpack.c.l.b16 %v245
      %v252 = vunpack.c.l.b16 %v246
      %v253 = vpack.c.b16 %v251, %v250
      %v254 = vpack.c.b16 %v252, %v252
      %v263 = vunpack.c.l.b16 %v233
      %v264 = vunpack.c.l.b16 %v234
      %v265 = vunpack.c.l.b16 %v235
      %v266 = vunpack.c.l.b16 %v236
      %v267 = vunpack.c.l.b16 %v237
      %v268 = vunpack.c.l.b16 %v238
      %v269 = vunpack.c.l.b16 %v239
      %v270 = vunpack.c.l.b16 %v240
      %v271 = vpack.c.b16 %v264, %v263
      %v272 = vpack.c.b16 %v266, %v265
      %v273 = vpack.c.b16 %v268, %v267
      %v274 = vpack.c.b16 %v270, %v269
      %vm279 = vcmask 523264
      %v281 = vsel %vm279, %v253, 0
      %v284 = vsel %vm279, %v254, 0
      %286 = vmatprep.subr.bf16.mxu0 0
      %287 = vmatpush1.bf16.msra.mxu0 %v271
      %288 = vmatprep.subr.bf16.mxu0 0
      %289 = vmatpush1.bf16.msra.mxu0 %v272
      %290 = vmatprep.subr.bf16.mxu0 0
      %291 = vmatpush1.bf16.msra.mxu0 %v273
      %292 = vmatprep.subr.bf16.mxu0 0
      %293 = vmatpush1.bf16.msra.mxu0 %v274
      %294 = vmatprep.subr.bf16.mxu0 0
      %295 = vmatpush1.bf16.msra.mxu0 0
      %296 = vmatprep.subr.bf16.mxu0 0
      %297 = vmatpush1.bf16.msra.mxu0 0
      %298 = vmatprep.subr.bf16.mxu0 0
      %299 = vmatpush1.bf16.msra.mxu0 0
      %300 = vmatprep.subr.bf16.mxu0 0
      %301 = vmatpush1.bf16.msra.mxu0 0
      %302 = vmatprep.subr.bf16.mxu0 0
      %303 = vmatpush1.bf16.msra.mxu0 0
      %304 = vmatprep.subr.bf16.mxu0 0
      %305 = vmatpush1.bf16.msra.mxu0 0
      %306 = vmatprep.subr.bf16.mxu0 0
      %307 = vmatpush1.bf16.msra.mxu0 0
      %308 = vmatprep.subr.bf16.mxu0 0
      %309 = vmatpush1.bf16.msra.mxu0 0
      %310 = vmatprep.subr.bf16.mxu0 0
      %311 = vmatpush1.bf16.msra.mxu0 0
      %312 = vmatprep.subr.bf16.mxu0 0
      %313 = vmatpush1.bf16.msra.mxu0 0
      %314 = vmatprep.subr.bf16.mxu0 0
      %315 = vmatpush1.bf16.msra.mxu0 0
      %316 = vmatprep.subr.bf16.mxu0 0
      %317 = vmatpush1.bf16.msra.mxu0 0
      %318 = vmatprep.mubr.bf16.mxu0 0
      %319 = vmatmul.mubr.bf16.gmra.mrb[0].mxu0 %v281
      %v320 = vpop.f32.mrb[0].mxu0
      %v321 = vadd.f32 %v241, %v320
      %v322 = vpop.f32.mrb[0].mxu0
      %v323 = vpop.f32.mrb[0].mxu0
      %v324 = vadd.f32 %v242, %v323
      %v325 = vpop.f32.mrb[0].mxu0
      %326 = vmatprep.mubr.bf16.mxu0 0
      %327 = vmatmul.mubr.bf16.gmra.mrb[0].mxu0 %v284
      %v328 = vpop.f32.mrb[0].mxu0
      %v329 = vadd.f32 %v243, %v328
      %v330 = vpop.f32.mrb[0].mxu0
      %v331 = vpop.f32.mrb[0].mxu0
      %v332 = vpop.f32.mrb[0].mxu0
      %333 = vdwg.mxu0
      %334 = vst [vmem:[%s230] sm:$0xff] %v321
      %335 = vst [vmem:[%s230 + $0x8] sm:$0xff] %v324
      %336 = vst [vmem:[%s230 + $0x10] sm:$0x1] %v329
      %s337 = smul.u32 3, %s18
      %p338 = scmp.lt.s32.totalorder %s19, 1
      %s339 = scalar_select %p338, %s19, 1
      %p340 = scmp.lt.s32.totalorder %s337, 2
      %s341 = scalar_select %p340, %s337, 2
      %s342 = smul.addr %s339, 3
      %s343 = sadd.s32 %s341, %s342
      %s344 = smul.addr %s343, 8
      %s345 = scalar_lea.vmem %s3, %s344
      // Predicated region
      $region33: #{patch_embedding.1} parent=31 // pred_check
        %p346 = pneg %p121
      $region34: #{patch_embedding.1} parent=31 // pred_check_branch
        %348 = sbr.rel (%p346) target = $region36
      $region35: #{patch_embedding.1} parent=31 // pred_region
        %s349 = smul.u32 3, %s18
      $region36: #{patch_embedding.1} parent=31 // pred_fallthru
        _
    $region32: #{patch_embedding.1} parent=5 // pred_fallthru
      _
    %p350 = scmp.le.s32.totalorder 2, %s9
    // Predicated region
    $region37: #{patch_embedding.1} parent=5 // pred_check
      %p351 = pneg %p350
    $region38: #{patch_embedding.1} parent=5 // pred_check_branch
      %353 = sbr.rel (%p351) target = $region40
    $region39: #{patch_embedding.1} parent=5 // pred_region
      %s354 = ssub.s32 %s9, 2
      // Predicated region
      $region41: #{patch_embedding.1} parent=39 // pred_check
        %p355 = pneg %p127
      $region42: #{patch_embedding.1} parent=39 // pred_check_branch
        %357 = sbr.rel (%p355) target = $region44
      $region43: #{patch_embedding.1} parent=39 // pred_region
        %s358 = smul.u32 3, %s20
        %p359 = scmp.lt.s32.totalorder %s21, 1
        %s360 = scalar_select %p359, %s21, 1
        %p361 = scmp.lt.s32.totalorder %s358, 2
        %s362 = scalar_select %p361, %s358, 2
        %s363 = smul.addr %s360, 3
        %s364 = sadd.s32 %s362, %s363
        %s365 = smul.addr %s364, 8
        %s366 = scalar_lea.vmem %s3, %s365
      $region44: #{patch_embedding.1} parent=39 // pred_fallthru
        _
    $region40: #{patch_embedding.1} parent=5 // pred_fallthru
      _
  $region6: #{patch_embedding.1} parent=0 // loop_footer
    %s13 = sadd.s32 1, %s9
  $region7: #{patch_embedding.1} parent=0 // loop_footer_branch
    %8 = sbr.rel target = $region3
  $region8: #{patch_embedding.1} parent=0 // loop_exit
    _

</llo_original>
